<compile_context>
chip_gen: v7x
topology: tpu7x:2x2x1
jax: 0.10.0
libtpu: 0.0.40
codegen_flags: <defaults>
</compile_context>

<pallas_src>
import jax
import jax.numpy as jnp
from jax.experimental import pallas as pl
from jax.experimental.pallas import tpu as pltpu

LANE = 128


def _round_up(n, m=LANE):
    return pl.cdiv(n, m) * m


# --------------------------------------------------------------------------- #
# Kernel
# --------------------------------------------------------------------------- #
def _make_varmdc_kernel(F, z_dim, hs, H, Hpad, out_total, seg_x, seg_l):
    """H = (num_dim + 1) * hs; Hpad = round_up(H, 128)."""

    def kernel(x_ref, wF_ref, wZ_ref, ew2_ref, dw2_ref, hw2_ref,
               hb1_ref, hb2_ref, eb1_ref, eb2_ref, db1_ref, db2_ref,
               out_ref):
        f32 = jnp.float32
        x = x_ref[...]                                             # (Bt, F)

        # ---- fused shared-LHS matmul #1: one MXU push covers the heads'
        #      X-part first layer (cols 0:H) AND enc_w1 (cols Hpad:Hpad+hs).
        #      Result slices land on 128-aligned lane offsets.
        xw = jnp.dot(x, wF_ref[...], preferred_element_type=f32)  # (Bt, Hpad+hs)

        # ---- encoder: Linear -> ReLU -> (dropout=id) -> Linear -> ReLU ----
        he = jnp.maximum(xw[:, Hpad:Hpad + hs] + eb1_ref[...], 0.0)
        z = jnp.maximum(
            jnp.dot(he, ew2_ref[...], preferred_element_type=f32) + eb2_ref[...],
            0.0)                                                   # (Bt, z_dim)

        # ---- fused shared-LHS matmul #2: heads' Z-part (cols 0:H) AND dec_w1.
        zw = jnp.dot(z, wZ_ref[...], preferred_element_type=f32)  # (Bt, Hpad+hs)

        # ---- decoder: Linear -> ReLU -> (dropout=id) -> Linear, sigmoid ----
        hd = jnp.maximum(zw[:, Hpad:Hpad + hs] + db1_ref[...], 0.0)
        pre = jnp.dot(hd, dw2_ref[...], preferred_element_type=f32) + db2_ref[...]
        # sigmoid via EUP exp + EUP approx reciprocal (no VPU divide).
        x_hat = pl.reciprocal(1.0 + jnp.exp(-pre), approx=True)   # (Bt, F)

        # ---- fused classifier heads on XZ = cat(X, Z), without a lane concat:
        #      X @ W1x and Z @ W1z already live in xw / zw columns 0:H.
        hh = jnp.maximum(xw[:, 0:H] + zw[:, 0:H] + hb1_ref[...], 0.0)   # (Bt, H)
        logits = (jnp.dot(hh, hw2_ref[...], preferred_element_type=f32)
                  + hb2_ref[...])                                  # (Bt, out_total)

        # ---- 128-aligned output segments; NO zero-fill of the slab.
        #      Pad lanes stay uninitialized — the wrapper never exposes them.
        out_ref[:, 0:z_dim] = z
        out_ref[:, seg_x:seg_x + F] = x_hat
        out_ref[:, seg_l:seg_l + out_total] = logits

    return kernel


# --------------------------------------------------------------------------- #
# Wrapper
# --------------------------------------------------------------------------- #
def varmdc_forward(x, enc, dec, classifiers, joint):
    """Fused VarMDC forward (br=True, cp=True).

    enc / dec / classifiers[i] / joint are (w1, b1, w2, b2) with weights stored
    (in, out) and biases (1, out). Classifier first-layer rows are ordered
    [X-rows; Z-rows], matching XZ = cat(X, Z).
    Returns (Z, X_hat, pred_probs(list of logits), joint_probs(logits)).
    """
    B, F = x.shape
    hs = enc[0].shape[1]
    z_dim = enc[2].shape[1]
    heads = list(classifiers) + [joint]
    H = len(heads) * hs
    Hpad = _round_up(H)
    head_out = [h[2].shape[1] for h in heads]
    out_total = sum(head_out)

    # 128-aligned output slab layout: z @ 0, x_hat @ seg_x, logits @ seg_l.
    seg_x = _round_up(z_dim)
    seg_l = seg_x + _round_up(F)
    out_w = seg_l + _round_up(out_total)

    # ---- host-side parameter packing (pure layout plumbing) ----
    def _pad_cols(a, width):
        p = width - a.shape[1]
        if p == 0:
            return a
        return jnp.concatenate([a, jnp.zeros((a.shape[0], p), a.dtype)], axis=1)

    head_w1x = jnp.concatenate([h[0][:F, :] for h in heads], axis=1)   # (F, H)
    head_w1z = jnp.concatenate([h[0][F:, :] for h in heads], axis=1)   # (z_dim, H)
    head_b1 = jnp.concatenate([h[1] for h in heads], axis=1)           # (1, H)
    head_w2 = jax.scipy.linalg.block_diag(*[h[2] for h in heads])      # (H, out_total)
    head_b2 = jnp.concatenate([h[3] for h in heads], axis=1)           # (1, out_total)

    # Packed shared-LHS weight buffers: wide head part first, enc/dec first
    # layer at a 128-aligned column offset (zero-padded gap if H % 128 != 0).
    wF = jnp.concatenate([_pad_cols(head_w1x, Hpad), enc[0]], axis=1)  # (F, Hpad+hs)
    wZ = jnp.concatenate([_pad_cols(head_w1z, Hpad), dec[0]], axis=1)  # (z_dim, Hpad+hs)
    enc_w2, dec_w2 = enc[2], dec[2]
    enc_b1, enc_b2 = enc[1], enc[3]
    dec_b1, dec_b2 = dec[1], dec[3]

    # ---- row tiling: shard large batches across grid steps / TensorCores ----
    if B >= 256 and B % 128 == 0:
        Bt = 128
    else:
        Bt = B
    grid = (B // Bt,)

    def _resident(shape):
        nd = len(shape)
        return pl.BlockSpec(shape, lambda i, _nd=nd: (0,) * _nd)

    in_specs = [
        pl.BlockSpec((Bt, F), lambda i: (i, 0)),       # x, blocked over rows
        _resident(wF.shape), _resident(wZ.shape),
        _resident(enc_w2.shape), _resident(dec_w2.shape), _resident(head_w2.shape),
        _resident(head_b1.shape), _resident(head_b2.shape),
        _resident(enc_b1.shape), _resident(enc_b2.shape),
        _resident(dec_b1.shape), _resident(dec_b2.shape),
    ]
    out_specs = pl.BlockSpec((Bt, out_w), lambda i: (i, 0))

    flops = 2 * B * (F * wF.shape[1] + hs * z_dim + z_dim * wZ.shape[1]
                     + hs * F + H * out_total)
    bytes_accessed = 4 * int(
        x.size + wF.size + wZ.size + enc_w2.size + dec_w2.size + head_w2.size
        + head_b1.size + head_b2.size + enc_b1.size + enc_b2.size
        + dec_b1.size + dec_b2.size + B * out_w)
    cost = pl.CostEstimate(flops=flops, transcendentals=2 * B * F,
                           bytes_accessed=bytes_accessed)

    slab = pl.pallas_call(
        _make_varmdc_kernel(F, z_dim, hs, H, Hpad, out_total, seg_x, seg_l),
        out_shape=jax.ShapeDtypeStruct((B, out_w), jnp.float32),
        grid=grid,
        in_specs=in_specs,
        out_specs=out_specs,
        compiler_params=pltpu.CompilerParams(dimension_semantics=("parallel",)),
        cost_estimate=cost,
    )(x, wF, wZ, enc_w2, dec_w2, head_w2,
      head_b1, head_b2, enc_b1, enc_b2, dec_b1, dec_b2)

    z = slab[:, :z_dim]
    x_hat = slab[:, seg_x:seg_x + F]
    off = seg_l
    head_logits = []
    for n in head_out:
        head_logits.append(slab[:, off:off + n])
        off += n
    pred_probs = head_logits[:-1]
    joint_probs = head_logits[-1]
    return z, x_hat, pred_probs, joint_probs


# --------------------------------------------------------------------------- #
# Pure-JAX reference (mirrors the PyTorch module)
# --------------------------------------------------------------------------- #
def _mlp_ref(v, w1, b1, w2, b2, out_relu):
    h = jnp.maximum(v @ w1 + b1, 0.0)
    o = h @ w2 + b2
    return jnp.maximum(o, 0.0) if out_relu else o


def varmdc_reference(x, enc, dec, classifiers, joint):
    z = _mlp_ref(x, *enc, out_relu=True)
    x_hat = jax.nn.sigmoid(_mlp_ref(z, *dec, out_relu=False))
    xz = jnp.concatenate([x, z], axis=1)
    preds = [_mlp_ref(xz, *c, out_relu=False) for c in classifiers]
    joint_p = _mlp_ref(xz, *joint, out_relu=False)
    return z, x_hat, preds, joint_p


# --------------------------------------------------------------------------- #
# Deterministic parameter construction (PyTorch-like init)
# --------------------------------------------------------------------------- #
def _linear_init(key, fan_in, fan_out):
    k_w, k_b = jax.random.split(key)
    bound = 1.0 / float(fan_in) ** 0.5
    w = jax.random.uniform(k_w, (fan_in, fan_out), jnp.float32, -bound, bound)
    b = jax.random.uniform(k_b, (1, fan_out), jnp.float32, -bound, bound)
    return w, b


def _mlp_init(key, d_in, d_out, hidden):
    k1, k2 = jax.random.split(key)
    w1, b1 = _linear_init(k1, d_in, hidden)
    w2, b2 = _linear_init(k2, hidden, d_out)
    return (w1, b1, w2, b2)


if __name__ == "__main__":
    configs = {
        "rand_seed": 0,
        "num_dim": 3,
        "hidden_size": 32,
        "dim_z": 16,
        "num_per_dim": [4, 5, 6],
        "num_feature": 32,
        "num_valid": 10,
    }
    B = 8

    root = jax.random.PRNGKey(0)
    k_x, k_enc, k_dec, k_cls, k_joint = jax.random.split(root, 5)

    F = configs["num_feature"]
    hs = configs["hidden_size"]
    z_dim = configs["dim_z"]

    enc = _mlp_init(k_enc, F, z_dim, hs)
    dec = _mlp_init(k_dec, z_dim, F, hs)
    cls_keys = jax.random.split(k_cls, configs["num_dim"])
    classifiers = [
        _mlp_init(cls_keys[i], z_dim + F, configs["num_per_dim"][i], hs)
        for i in range(configs["num_dim"])
    ]
    joint = _mlp_init(k_joint, z_dim + F, configs["num_valid"] + 1, hs)

    x = jax.random.normal(k_x, (B, F), jnp.float32)

    fwd = jax.jit(varmdc_forward)
    z, x_hat, pred_probs, joint_probs = fwd(x, enc, dec, classifiers, joint)
    jax.block_until_ready((z, x_hat, pred_probs, joint_probs))

    # shape checks
    assert z.shape == (B, z_dim)
    assert x_hat.shape == (B, F)
    assert [p.shape for p in pred_probs] == [(B, n) for n in configs["num_per_dim"]]
    assert joint_probs.shape == (B, configs["num_valid"] + 1)

    # numeric check vs. plain-JAX reference.
    # Tolerances: z / logits go through exact-elementwise + MXU paths (slack
    # for possible default-precision pass-count differences between Mosaic and
    # XLA dots); x_hat additionally uses the EUP approx-reciprocal sigmoid.
    z_r, xh_r, pp_r, jp_r = varmdc_reference(x, enc, dec, classifiers, joint)

    def _close(a, b, tol):
        return bool(jnp.max(jnp.abs(a - b)) <= tol)

    assert _close(z, z_r, 1e-2)
    assert _close(x_hat, xh_r, 2e-2)
    for p, pr in zip(pred_probs, pp_r):
        assert _close(p, pr, 2e-2)
    assert _close(joint_probs, jp_r, 2e-2)

    print("KERNEL_OK")
</pallas_src>

<mosaic_0001>
module attributes {stable_mosaic.version = 11 : i64} {
  func.func @kernel(%arg0: i32, %arg1: memref<8x32xf32, #tpu.memory_space<vmem>>, %arg2: memref<32x160xf32, #tpu.memory_space<vmem>>, %arg3: memref<16x160xf32, #tpu.memory_space<vmem>>, %arg4: memref<32x16xf32, #tpu.memory_space<vmem>>, %arg5: memref<32x32xf32, #tpu.memory_space<vmem>>, %arg6: memref<128x26xf32, #tpu.memory_space<vmem>>, %arg7: memref<1x128xf32, #tpu.memory_space<vmem>>, %arg8: memref<1x26xf32, #tpu.memory_space<vmem>>, %arg9: memref<1x32xf32, #tpu.memory_space<vmem>>, %arg10: memref<1x16xf32, #tpu.memory_space<vmem>>, %arg11: memref<1x32xf32, #tpu.memory_space<vmem>>, %arg12: memref<1x32xf32, #tpu.memory_space<vmem>>, %arg13: memref<8x384xf32, #tpu.memory_space<vmem>>) attributes {dimension_semantics = [#tpu.dimension_semantics<parallel>], iteration_bounds = array<i64: 1>, scalar_prefetch = 0 : i64, scratch_operands = 0 : i64, tpu.core_type = #tpu.core_type<tc>, window_params = [{transform_indices = @transform_0, window_bounds = array<i64: 8, 32>}, {pipeline_mode = #tpu.pipeline_mode<synchronous>, transform_indices = @transform_1, window_bounds = array<i64: 32, 160>}, {pipeline_mode = #tpu.pipeline_mode<synchronous>, transform_indices = @transform_2, window_bounds = array<i64: 16, 160>}, {pipeline_mode = #tpu.pipeline_mode<synchronous>, transform_indices = @transform_3, window_bounds = array<i64: 32, 16>}, {pipeline_mode = #tpu.pipeline_mode<synchronous>, transform_indices = @transform_4, window_bounds = array<i64: 32, 32>}, {pipeline_mode = #tpu.pipeline_mode<synchronous>, transform_indices = @transform_5, window_bounds = array<i64: 128, 26>}, {pipeline_mode = #tpu.pipeline_mode<synchronous>, transform_indices = @transform_6, window_bounds = array<i64: 1, 128>}, {pipeline_mode = #tpu.pipeline_mode<synchronous>, transform_indices = @transform_7, window_bounds = array<i64: 1, 26>}, {pipeline_mode = #tpu.pipeline_mode<synchronous>, transform_indices = @transform_8, window_bounds = array<i64: 1, 32>}, {pipeline_mode = #tpu.pipeline_mode<synchronous>, transform_indices = @transform_9, window_bounds = array<i64: 1, 16>}, {pipeline_mode = #tpu.pipeline_mode<synchronous>, transform_indices = @transform_10, window_bounds = array<i64: 1, 32>}, {pipeline_mode = #tpu.pipeline_mode<synchronous>, transform_indices = @transform_11, window_bounds = array<i64: 1, 32>}, {transform_indices = @transform_12, window_bounds = array<i64: 8, 384>}]} {
    %c0 = arith.constant 0 : index
    %c0_0 = arith.constant 0 : index
    %0 = vector.load %arg1[%c0, %c0_0] : memref<8x32xf32, #tpu.memory_space<vmem>>, vector<8x32xf32>
    %c0_1 = arith.constant 0 : index
    %c0_2 = arith.constant 0 : index
    %1 = vector.load %arg2[%c0_1, %c0_2] : memref<32x160xf32, #tpu.memory_space<vmem>>, vector<32x160xf32>
    %cst = arith.constant dense<0.000000e+00> : vector<8x160xf32>
    %2 = tpu.matmul %0, %1, %cst {dimension_numbers = #tpu.dot_dimension_numbers<[1], [0], [0], [1], [0, 0, 1, 1], [], []>} : vector<8x32xf32>, vector<32x160xf32>, vector<8x160xf32> -> vector<8x160xf32>
    %3 = vector.extract_strided_slice %2 {offsets = [0, 128], sizes = [8, 32], strides = [1, 1]} : vector<8x160xf32> to vector<8x32xf32>
    %c0_3 = arith.constant 0 : index
    %c0_4 = arith.constant 0 : index
    %4 = vector.load %arg9[%c0_3, %c0_4] : memref<1x32xf32, #tpu.memory_space<vmem>>, vector<1x32xf32>
    %5 = vector.broadcast %4 : vector<1x32xf32> to vector<8x32xf32>
    %6 = arith.addf %3, %5 : vector<8x32xf32>
    %cst_5 = arith.constant 0.000000e+00 : f32
    %7 = vector.broadcast %cst_5 : f32 to vector<8x32xf32>
    %8 = arith.maximumf %6, %7 : vector<8x32xf32>
    %c0_6 = arith.constant 0 : index
    %c0_7 = arith.constant 0 : index
    %9 = vector.load %arg4[%c0_6, %c0_7] : memref<32x16xf32, #tpu.memory_space<vmem>>, vector<32x16xf32>
    %cst_8 = arith.constant dense<0.000000e+00> : vector<8x16xf32>
    %10 = tpu.matmul %8, %9, %cst_8 {dimension_numbers = #tpu.dot_dimension_numbers<[1], [0], [0], [1], [0, 0, 1, 1], [], []>} : vector<8x32xf32>, vector<32x16xf32>, vector<8x16xf32> -> vector<8x16xf32>
    %c0_9 = arith.constant 0 : index
    %c0_10 = arith.constant 0 : index
    %11 = vector.load %arg10[%c0_9, %c0_10] : memref<1x16xf32, #tpu.memory_space<vmem>>, vector<1x16xf32>
    %12 = vector.broadcast %11 : vector<1x16xf32> to vector<8x16xf32>
    %13 = arith.addf %10, %12 : vector<8x16xf32>
    %cst_11 = arith.constant 0.000000e+00 : f32
    %14 = vector.broadcast %cst_11 : f32 to vector<8x16xf32>
    %15 = arith.maximumf %13, %14 : vector<8x16xf32>
    %c0_12 = arith.constant 0 : index
    %c0_13 = arith.constant 0 : index
    %16 = vector.load %arg3[%c0_12, %c0_13] : memref<16x160xf32, #tpu.memory_space<vmem>>, vector<16x160xf32>
    %cst_14 = arith.constant dense<0.000000e+00> : vector<8x160xf32>
    %17 = tpu.matmul %15, %16, %cst_14 {dimension_numbers = #tpu.dot_dimension_numbers<[1], [0], [0], [1], [0, 0, 1, 1], [], []>} : vector<8x16xf32>, vector<16x160xf32>, vector<8x160xf32> -> vector<8x160xf32>
    %18 = vector.extract_strided_slice %17 {offsets = [0, 128], sizes = [8, 32], strides = [1, 1]} : vector<8x160xf32> to vector<8x32xf32>
    %c0_15 = arith.constant 0 : index
    %c0_16 = arith.constant 0 : index
    %19 = vector.load %arg11[%c0_15, %c0_16] : memref<1x32xf32, #tpu.memory_space<vmem>>, vector<1x32xf32>
    %20 = vector.broadcast %19 : vector<1x32xf32> to vector<8x32xf32>
    %21 = arith.addf %18, %20 : vector<8x32xf32>
    %cst_17 = arith.constant 0.000000e+00 : f32
    %22 = vector.broadcast %cst_17 : f32 to vector<8x32xf32>
    %23 = arith.maximumf %21, %22 : vector<8x32xf32>
    %c0_18 = arith.constant 0 : index
    %c0_19 = arith.constant 0 : index
    %24 = vector.load %arg5[%c0_18, %c0_19] : memref<32x32xf32, #tpu.memory_space<vmem>>, vector<32x32xf32>
    %cst_20 = arith.constant dense<0.000000e+00> : vector<8x32xf32>
    %25 = tpu.matmul %23, %24, %cst_20 {dimension_numbers = #tpu.dot_dimension_numbers<[1], [0], [0], [1], [0, 0, 1, 1], [], []>} : vector<8x32xf32>, vector<32x32xf32>, vector<8x32xf32> -> vector<8x32xf32>
    %c0_21 = arith.constant 0 : index
    %c0_22 = arith.constant 0 : index
    %26 = vector.load %arg12[%c0_21, %c0_22] : memref<1x32xf32, #tpu.memory_space<vmem>>, vector<1x32xf32>
    %27 = vector.broadcast %26 : vector<1x32xf32> to vector<8x32xf32>
    %28 = arith.addf %25, %27 : vector<8x32xf32>
    %cst_23 = arith.constant 0.000000e+00 : f32
    %29 = vector.broadcast %cst_23 : f32 to vector<8x32xf32>
    %30 = arith.subf %29, %28 : vector<8x32xf32>
    %31 = math.exp %30 : vector<8x32xf32>
    %cst_24 = arith.constant 1.000000e+00 : f32
    %32 = vector.broadcast %cst_24 : f32 to vector<8x32xf32>
    %33 = arith.addf %32, %31 : vector<8x32xf32>
    %34 = tpu.reciprocal %33 {approx = true} : vector<8x32xf32> -> vector<8x32xf32>
    %35 = vector.extract_strided_slice %2 {offsets = [0, 0], sizes = [8, 128], strides = [1, 1]} : vector<8x160xf32> to vector<8x128xf32>
    %36 = vector.extract_strided_slice %17 {offsets = [0, 0], sizes = [8, 128], strides = [1, 1]} : vector<8x160xf32> to vector<8x128xf32>
    %37 = arith.addf %35, %36 : vector<8x128xf32>
    %c0_25 = arith.constant 0 : index
    %c0_26 = arith.constant 0 : index
    %38 = vector.load %arg7[%c0_25, %c0_26] : memref<1x128xf32, #tpu.memory_space<vmem>>, vector<1x128xf32>
    %39 = vector.broadcast %38 : vector<1x128xf32> to vector<8x128xf32>
    %40 = arith.addf %37, %39 : vector<8x128xf32>
    %cst_27 = arith.constant 0.000000e+00 : f32
    %41 = vector.broadcast %cst_27 : f32 to vector<8x128xf32>
    %42 = arith.maximumf %40, %41 : vector<8x128xf32>
    %c0_28 = arith.constant 0 : index
    %c0_29 = arith.constant 0 : index
    %43 = vector.load %arg6[%c0_28, %c0_29] : memref<128x26xf32, #tpu.memory_space<vmem>>, vector<128x26xf32>
    %cst_30 = arith.constant dense<0.000000e+00> : vector<8x26xf32>
    %44 = tpu.matmul %42, %43, %cst_30 {dimension_numbers = #tpu.dot_dimension_numbers<[1], [0], [0], [1], [0, 0, 1, 1], [], []>} : vector<8x128xf32>, vector<128x26xf32>, vector<8x26xf32> -> vector<8x26xf32>
    %c0_31 = arith.constant 0 : index
    %c0_32 = arith.constant 0 : index
    %45 = vector.load %arg8[%c0_31, %c0_32] : memref<1x26xf32, #tpu.memory_space<vmem>>, vector<1x26xf32>
    %46 = vector.broadcast %45 : vector<1x26xf32> to vector<8x26xf32>
    %47 = arith.addf %44, %46 : vector<8x26xf32>
    %c0_33 = arith.constant 0 : index
    %c0_34 = arith.constant 0 : index
    %48 = vector.load %arg13[%c0_33, %c0_34] : memref<8x384xf32, #tpu.memory_space<vmem>>, vector<8x16xf32>
    tpu.vector_store %arg13[%c0_33, %c0_34], %15 {strides = array<i32>} : memref<8x384xf32, #tpu.memory_space<vmem>>, vector<8x16xf32>,
    %c0_35 = arith.constant 0 : index
    %c128 = arith.constant 128 : index
    %49 = vector.load %arg13[%c0_35, %c128] : memref<8x384xf32, #tpu.memory_space<vmem>>, vector<8x32xf32>
    tpu.vector_store %arg13[%c0_35, %c128], %34 {strides = array<i32>} : memref<8x384xf32, #tpu.memory_space<vmem>>, vector<8x32xf32>,
    %c0_36 = arith.constant 0 : index
    %c256 = arith.constant 256 : index
    %50 = vector.load %arg13[%c0_36, %c256] : memref<8x384xf32, #tpu.memory_space<vmem>>, vector<8x26xf32>
    tpu.vector_store %arg13[%c0_36, %c256], %47 {strides = array<i32>} : memref<8x384xf32, #tpu.memory_space<vmem>>, vector<8x26xf32>,
    return
  }
  func.func @transform_0(%arg0: i32) -> (i32, i32) {
    %c0_i32 = arith.constant 0 : i32
    %c0_i32_0 = arith.constant 0 : i32
    return %arg0, %c0_i32 : i32, i32
  }
  func.func @transform_1(%arg0: i32) -> (i32, i32) {
    %c0_i32 = arith.constant 0 : i32
    %c0_i32_0 = arith.constant 0 : i32
    %c0_i32_1 = arith.constant 0 : i32
    return %c0_i32, %c0_i32_0 : i32, i32
  }
  func.func @transform_2(%arg0: i32) -> (i32, i32) {
    %c0_i32 = arith.constant 0 : i32
    %c0_i32_0 = arith.constant 0 : i32
    %c0_i32_1 = arith.constant 0 : i32
    return %c0_i32, %c0_i32_0 : i32, i32
  }
  func.func @transform_3(%arg0: i32) -> (i32, i32) {
    %c0_i32 = arith.constant 0 : i32
    %c0_i32_0 = arith.constant 0 : i32
    %c0_i32_1 = arith.constant 0 : i32
    return %c0_i32, %c0_i32_0 : i32, i32
  }
  func.func @transform_4(%arg0: i32) -> (i32, i32) {
    %c0_i32 = arith.constant 0 : i32
    %c0_i32_0 = arith.constant 0 : i32
    %c0_i32_1 = arith.constant 0 : i32
    return %c0_i32, %c0_i32_0 : i32, i32
  }
  func.func @transform_5(%arg0: i32) -> (i32, i32) {
    %c0_i32 = arith.constant 0 : i32
    %c0_i32_0 = arith.constant 0 : i32
    %c0_i32_1 = arith.constant 0 : i32
    return %c0_i32, %c0_i32_0 : i32, i32
  }
  func.func @transform_6(%arg0: i32) -> (i32, i32) {
    %c0_i32 = arith.constant 0 : i32
    %c0_i32_0 = arith.constant 0 : i32
    %c0_i32_1 = arith.constant 0 : i32
    return %c0_i32, %c0_i32_0 : i32, i32
  }
  func.func @transform_7(%arg0: i32) -> (i32, i32) {
    %c0_i32 = arith.constant 0 : i32
    %c0_i32_0 = arith.constant 0 : i32
    %c0_i32_1 = arith.constant 0 : i32
    return %c0_i32, %c0_i32_0 : i32, i32
  }
  func.func @transform_8(%arg0: i32) -> (i32, i32) {
    %c0_i32 = arith.constant 0 : i32
    %c0_i32_0 = arith.constant 0 : i32
    %c0_i32_1 = arith.constant 0 : i32
    return %c0_i32, %c0_i32_0 : i32, i32
  }
  func.func @transform_9(%arg0: i32) -> (i32, i32) {
    %c0_i32 = arith.constant 0 : i32
    %c0_i32_0 = arith.constant 0 : i32
    %c0_i32_1 = arith.constant 0 : i32
    return %c0_i32, %c0_i32_0 : i32, i32
  }
  func.func @transform_10(%arg0: i32) -> (i32, i32) {
    %c0_i32 = arith.constant 0 : i32
    %c0_i32_0 = arith.constant 0 : i32
    %c0_i32_1 = arith.constant 0 : i32
    return %c0_i32, %c0_i32_0 : i32, i32
  }
  func.func @transform_11(%arg0: i32) -> (i32, i32) {
    %c0_i32 = arith.constant 0 : i32
    %c0_i32_0 = arith.constant 0 : i32
    %c0_i32_1 = arith.constant 0 : i32
    return %c0_i32, %c0_i32_0 : i32, i32
  }
  func.func @transform_12(%arg0: i32) -> (i32, i32) {
    %c0_i32 = arith.constant 0 : i32
    %c0_i32_0 = arith.constant 0 : i32
    return %arg0, %c0_i32 : i32, i32
  }
}

</mosaic_0001>

<llo_original>
// kernel: varmdc_forward.1
$region0: #{varmdc_forward.1}
  #allocation0 [shape = 'u32[]', space=smem, size = 0x4, offset = 0x4, fixed_abs, tag = 'smem constant byte address 0x4 - core index']
  #allocation1 [shape = 'u32[144,128]{1,0:T(1,128)}', space=vmem, size = 0x12000, scoped, tag = 'internal scratch']
  %s0 = inlined_call_operand.vmem [shape: f32[8,32], index: 0, kind: input, shape index: {}]
  %s1 = inlined_call_operand.vmem [shape: f32[32,160], index: 1, kind: input, shape index: {}]
  %s2 = inlined_call_operand.vmem [shape: f32[16,160], index: 2, kind: input, shape index: {}]
  %s3 = inlined_call_operand.vmem [shape: f32[32,16], index: 3, kind: input, shape index: {}]
  %s4 = inlined_call_operand.vmem [shape: f32[32,32], index: 4, kind: input, shape index: {}]
  %s5 = inlined_call_operand.vmem [shape: f32[128,26], index: 5, kind: input, shape index: {}]
  %s6 = inlined_call_operand.vmem [shape: f32[1,128], index: 6, kind: input, shape index: {}]
  %s7 = inlined_call_operand.vmem [shape: f32[1,26], index: 7, kind: input, shape index: {}]
  %s8 = inlined_call_operand.vmem [shape: f32[1,32], index: 8, kind: input, shape index: {}]
  %s9 = inlined_call_operand.vmem [shape: f32[1,16], index: 9, kind: input, shape index: {}]
  %s10 = inlined_call_operand.vmem [shape: f32[1,32], index: 10, kind: input, shape index: {}]
  %s11 = inlined_call_operand.vmem [shape: f32[1,32], index: 11, kind: input, shape index: {}]
  %s12 = inlined_call_operand.vmem [shape: f32[8,384], index: 12, kind: output, shape index: {}]
  %s13 = sld [smem:[#allocation0]]
  $region58: #{varmdc_forward.1} parent=0
    _
  %s15 = ssub.s32 1, %s13
  %s16 = scalar_select 0, %s15, %s13
  // Predicated region
  $region2: #{varmdc_forward.1} parent=0 // pred_check
    _
  $region3: #{varmdc_forward.1} parent=0 // pred_check_branch
    %18 = sbr.rel (0) target = $region5
  $region4: #{varmdc_forward.1} parent=0 // pred_region
    _
  $region5: #{varmdc_forward.1} parent=0 // pred_fallthru
    _
  // Predicated region
  $region6: #{varmdc_forward.1} parent=0 // pred_check
    _
  $region7: #{varmdc_forward.1} parent=0 // pred_check_branch
    %20 = sbr.rel (0) target = $region9
  $region8: #{varmdc_forward.1} parent=0 // pred_region
    _
  $region9: #{varmdc_forward.1} parent=0 // pred_fallthru
    _
  // Predicated region
  $region10: #{varmdc_forward.1} parent=0 // pred_check
    _
  $region11: #{varmdc_forward.1} parent=0 // pred_check_branch
    %22 = sbr.rel (0) target = $region13
  $region12: #{varmdc_forward.1} parent=0 // pred_region
    _
  $region13: #{varmdc_forward.1} parent=0 // pred_fallthru
    _
  // Predicated region
  $region14: #{varmdc_forward.1} parent=0 // pred_check
    _
  $region15: #{varmdc_forward.1} parent=0 // pred_check_branch
    %24 = sbr.rel (0) target = $region17
  $region16: #{varmdc_forward.1} parent=0 // pred_region
    _
  $region17: #{varmdc_forward.1} parent=0 // pred_fallthru
    _
  // Predicated region
  $region18: #{varmdc_forward.1} parent=0 // pred_check
    _
  $region19: #{varmdc_forward.1} parent=0 // pred_check_branch
    %26 = sbr.rel (0) target = $region21
  $region20: #{varmdc_forward.1} parent=0 // pred_region
    _
  $region21: #{varmdc_forward.1} parent=0 // pred_fallthru
    _
  // Predicated region
  $region22: #{varmdc_forward.1} parent=0 // pred_check
    _
  $region23: #{varmdc_forward.1} parent=0 // pred_check_branch
    %28 = sbr.rel (0) target = $region25
  $region24: #{varmdc_forward.1} parent=0 // pred_region
    _
  $region25: #{varmdc_forward.1} parent=0 // pred_fallthru
    _
  // Predicated region
  $region26: #{varmdc_forward.1} parent=0 // pred_check
    _
  $region27: #{varmdc_forward.1} parent=0 // pred_check_branch
    %30 = sbr.rel (0) target = $region29
  $region28: #{varmdc_forward.1} parent=0 // pred_region
    _
  $region29: #{varmdc_forward.1} parent=0 // pred_fallthru
    _
  // Predicated region
  $region30: #{varmdc_forward.1} parent=0 // pred_check
    _
  $region31: #{varmdc_forward.1} parent=0 // pred_check_branch
    %32 = sbr.rel (0) target = $region33
  $region32: #{varmdc_forward.1} parent=0 // pred_region
    _
  $region33: #{varmdc_forward.1} parent=0 // pred_fallthru
    _
  // Predicated region
  $region34: #{varmdc_forward.1} parent=0 // pred_check
    _
  $region35: #{varmdc_forward.1} parent=0 // pred_check_branch
    %34 = sbr.rel (0) target = $region37
  $region36: #{varmdc_forward.1} parent=0 // pred_region
    _
  $region37: #{varmdc_forward.1} parent=0 // pred_fallthru
    _
  // Predicated region
  $region38: #{varmdc_forward.1} parent=0 // pred_check
    _
  $region39: #{varmdc_forward.1} parent=0 // pred_check_branch
    %36 = sbr.rel (0) target = $region41
  $region40: #{varmdc_forward.1} parent=0 // pred_region
    _
  $region41: #{varmdc_forward.1} parent=0 // pred_fallthru
    _
  // Predicated region
  $region42: #{varmdc_forward.1} parent=0 // pred_check
    _
  $region43: #{varmdc_forward.1} parent=0 // pred_check_branch
    %38 = sbr.rel (0) target = $region45
  $region44: #{varmdc_forward.1} parent=0 // pred_region
    _
  $region45: #{varmdc_forward.1} parent=0 // pred_fallthru
    _
  // Predicated region
  $region46: #{varmdc_forward.1} parent=0 // pred_check
    _
  $region47: #{varmdc_forward.1} parent=0 // pred_check_branch
    %40 = sbr.rel (0) target = $region49
  $region48: #{varmdc_forward.1} parent=0 // pred_region
    _
  $region49: #{varmdc_forward.1} parent=0 // pred_fallthru
    _
  %v41 = vld [vmem:[%s0] sm:$0xff]
  %v42 = vld [vmem:[%s1] sm:$0xff]
  %v43 = vld [vmem:[%s1 + $0x8] sm:$0xff]
  %v44 = vld [vmem:[%s1 + $0x10] sm:$0xff]
  %v45 = vld [vmem:[%s1 + $0x18] sm:$0xff]
  %v46 = vld [vmem:[%s1 + $0x20] sm:$0xff]
  %v47 = vld [vmem:[%s1 + $0x28] sm:$0xff]
  %v48 = vld [vmem:[%s1 + $0x30] sm:$0xff]
  %v49 = vld [vmem:[%s1 + $0x38] sm:$0xff]
  %vm50 = vcmask 261120
  %v52 = vsel %vm50, %v41, 0
  %54 = vmatprep.subr.mxu0 %v43
  %55 = vmatpush1.msra.mxu0 %v42
  %56 = vmatprep.subr.mxu0 %v45
  %57 = vmatpush1.msra.mxu0 %v44
  %58 = vmatprep.subr.mxu0 %v47
  %59 = vmatpush1.msra.mxu0 %v46
  %60 = vmatprep.subr.mxu0 %v49
  %61 = vmatpush1.msra.mxu0 %v48
  %62 = vmatprep.subr.mxu0 0.0
  %63 = vmatpush1.msra.mxu0 0.0
  %64 = vmatprep.subr.mxu0 0.0
  %65 = vmatpush1.msra.mxu0 0.0
  %66 = vmatprep.subr.mxu0 0.0
  %67 = vmatpush1.msra.mxu0 0.0
  %68 = vmatprep.subr.mxu0 0.0
  %69 = vmatpush1.msra.mxu0 0.0
  %70 = vmatprep.subr.mxu0 0.0
  %71 = vmatpush1.msra.mxu0 0.0
  %72 = vmatprep.subr.mxu0 0.0
  %73 = vmatpush1.msra.mxu0 0.0
  %74 = vmatprep.subr.mxu0 0.0
  %75 = vmatpush1.msra.mxu0 0.0
  %76 = vmatprep.subr.mxu0 0.0
  %77 = vmatpush1.msra.mxu0 0.0
  %78 = vmatprep.subr.mxu0 0.0
  %79 = vmatpush1.msra.mxu0 0.0
  %80 = vmatprep.subr.mxu0 0.0
  %81 = vmatpush1.msra.mxu0 0.0
  %82 = vmatprep.subr.mxu0 0.0
  %83 = vmatpush1.msra.mxu0 0.0
  %84 = vmatprep.subr.mxu0 0.0
  %85 = vmatpush1.msra.mxu0 0.0
  %86 = vmatprep.subr.mxu0 0.0
  %87 = vmatpush1.msra.mxu0 0.0
  %88 = vmatprep.subr.mxu0 0.0
  %89 = vmatpush1.msra.mxu0 0.0
  %90 = vmatprep.subr.mxu0 0.0
  %91 = vmatpush1.msra.mxu0 0.0
  %92 = vmatprep.subr.mxu0 0.0
  %93 = vmatpush1.msra.mxu0 0.0
  %94 = vmatprep.subr.mxu0 0.0
  %95 = vmatpush1.msra.mxu0 0.0
  %96 = vmatprep.subr.mxu0 0.0
  %97 = vmatpush1.msra.mxu0 0.0
  %98 = vmatprep.subr.mxu0 0.0
  %99 = vmatpush1.msra.mxu0 0.0
  %100 = vmatprep.subr.mxu0 0.0
  %101 = vmatpush1.msra.mxu0 0.0
  %102 = vmatprep.subr.mxu0 0.0
  %103 = vmatpush1.msra.mxu0 0.0
  %104 = vmatprep.subr.mxu0 0.0
  %105 = vmatpush1.msra.mxu0 0.0
  %106 = vmatprep.subr.mxu0 0.0
  %107 = vmatpush1.msra.mxu0 0.0
  %108 = vmatprep.subr.mxu0 0.0
  %109 = vmatpush1.msra.mxu0 0.0
  %110 = vmatprep.subr.mxu0 0.0
  %111 = vmatpush1.msra.mxu0 0.0
  %112 = vmatprep.subr.mxu0 0.0
  %113 = vmatpush1.msra.mxu0 0.0
  %114 = vmatprep.subr.mxu0 0.0
  %115 = vmatpush1.msra.mxu0 0.0
  %116 = vmatprep.subr.mxu0 0.0
  %117 = vmatpush1.msra.mxu0 0.0
  %118 = vmatprep.mubr.f32.mxu0 0.0
  %119 = vmatmul.mubr.f32.gmra.mrb[0].mxu0 %v52
  %v120 = vpop.f32.mrb[0].mxu0
  %v121 = vadd.f32 0.0, %v120
  %v122 = vpop.f32.mrb[0].mxu0
  %v123 = vadd.f32 0.0, %v122
  %124 = vdwg.mxu0
  %v125 = vld [vmem:[%s8] sm:$0x1]
  %v127 = vlaneseq
  %v128 = vshrl.u32 %v127, 7
  %v129 = vsub.s32 0, %v128
  %v130 = vrot.slane %v125, %v129
  %v132 = vadd.f32 %v123, %v130
  %v133 = vmax.f32 %v132, 0.0
  %v134 = vld [vmem:[%s3] sm:$0xff]
  %v135 = vld [vmem:[%s3 + $0x8] sm:$0xff]
  %v136 = vld [vmem:[%s3 + $0x10] sm:$0xff]
  %v137 = vld [vmem:[%s3 + $0x18] sm:$0xff]
  %v138 = vld [vmem:[%s9] sm:$0x1]
  %v140 = vlaneseq
  %v141 = vshrl.u32 %v140, 7
  %v142 = vsub.s32 0, %v141
  %v143 = vrot.slane %v138, %v142
  %v146 = vsel %vm50, %v133, 0
  %148 = vmatprep.subr.mxu0 0.0
  %149 = vmatpush1.msra.mxu0 %v134
  %150 = vmatprep.subr.mxu0 0.0
  %151 = vmatpush1.msra.mxu0 %v135
  %152 = vmatprep.subr.mxu0 0.0
  %153 = vmatpush1.msra.mxu0 %v136
  %154 = vmatprep.subr.mxu0 0.0
  %155 = vmatpush1.msra.mxu0 %v137
  %156 = vmatprep.subr.mxu0 0.0
  %157 = vmatpush1.msra.mxu0 0.0
  %158 = vmatprep.subr.mxu0 0.0
  %159 = vmatpush1.msra.mxu0 0.0
  %160 = vmatprep.subr.mxu0 0.0
  %161 = vmatpush1.msra.mxu0 0.0
  %162 = vmatprep.subr.mxu0 0.0
  %163 = vmatpush1.msra.mxu0 0.0
  %164 = vmatprep.subr.mxu0 0.0
  %165 = vmatpush1.msra.mxu0 0.0
  %166 = vmatprep.subr.mxu0 0.0
  %167 = vmatpush1.msra.mxu0 0.0
  %168 = vmatprep.subr.mxu0 0.0
  %169 = vmatpush1.msra.mxu0 0.0
  %170 = vmatprep.subr.mxu0 0.0
  %171 = vmatpush1.msra.mxu0 0.0
  %172 = vmatprep.subr.mxu0 0.0
  %173 = vmatpush1.msra.mxu0 0.0
  %174 = vmatprep.subr.mxu0 0.0
  %175 = vmatpush1.msra.mxu0 0.0
  %176 = vmatprep.subr.mxu0 0.0
  %177 = vmatpush1.msra.mxu0 0.0
  %178 = vmatprep.subr.mxu0 0.0
  %179 = vmatpush1.msra.mxu0 0.0
  %180 = vmatprep.subr.mxu0 0.0
  %181 = vmatpush1.msra.mxu0 0.0
  %182 = vmatprep.subr.mxu0 0.0
  %183 = vmatpush1.msra.mxu0 0.0
  %184 = vmatprep.subr.mxu0 0.0
  %185 = vmatpush1.msra.mxu0 0.0
  %186 = vmatprep.subr.mxu0 0.0
  %187 = vmatpush1.msra.mxu0 0.0
  %188 = vmatprep.subr.mxu0 0.0
  %189 = vmatpush1.msra.mxu0 0.0
  %190 = vmatprep.subr.mxu0 0.0
  %191 = vmatpush1.msra.mxu0 0.0
  %192 = vmatprep.subr.mxu0 0.0
  %193 = vmatpush1.msra.mxu0 0.0
  %194 = vmatprep.subr.mxu0 0.0
  %195 = vmatpush1.msra.mxu0 0.0
  %196 = vmatprep.subr.mxu0 0.0
  %197 = vmatpush1.msra.mxu0 0.0
  %198 = vmatprep.subr.mxu0 0.0
  %199 = vmatpush1.msra.mxu0 0.0
  %200 = vmatprep.subr.mxu0 0.0
  %201 = vmatpush1.msra.mxu0 0.0
  %202 = vmatprep.subr.mxu0 0.0
  %203 = vmatpush1.msra.mxu0 0.0
  %204 = vmatprep.subr.mxu0 0.0
  %205 = vmatpush1.msra.mxu0 0.0
  %206 = vmatprep.subr.mxu0 0.0
  %207 = vmatpush1.msra.mxu0 0.0
  %208 = vmatprep.subr.mxu0 0.0
  %209 = vmatpush1.msra.mxu0 0.0
  %210 = vmatprep.subr.mxu0 0.0
  %211 = vmatpush1.msra.mxu0 0.0
  %212 = vmatprep.mubr.f32.mxu0 0.0
  %213 = vmatmul.mubr.f32.gmra.mrb[0].mxu0 %v146
  %v214 = vpop.f32.mrb[0].mxu0
  %v215 = vadd.f32 %v143, %v214
  %v216 = vpop.f32.mrb[0].mxu0
  %217 = vdwg.mxu0
  %v218 = vmax.f32 %v215, 0.0
  %v219 = vld [vmem:[%s2] sm:$0xff]
  %v220 = vld [vmem:[%s2 + $0x8] sm:$0xff]
  %v221 = vld [vmem:[%s2 + $0x10] sm:$0xff]
  %v222 = vld [vmem:[%s2 + $0x18] sm:$0xff]
  %vm223 = vcmask 130048
  %v225 = vsel %vm223, %v218, 0
  %227 = vmatprep.subr.mxu0 %v220
  %228 = vmatpush1.msra.mxu0 %v219
  %229 = vmatprep.subr.mxu0 %v222
  %230 = vmatpush1.msra.mxu0 %v221
  %231 = vmatprep.subr.mxu0 0.0
  %232 = vmatpush1.msra.mxu0 0.0
  %233 = vmatprep.subr.mxu0 0.0
  %234 = vmatpush1.msra.mxu0 0.0
  %235 = vmatprep.subr.mxu0 0.0
  %236 = vmatpush1.msra.mxu0 0.0
  %237 = vmatprep.subr.mxu0 0.0
  %238 = vmatpush1.msra.mxu0 0.0
  %239 = vmatprep.subr.mxu0 0.0
  %240 = vmatpush1.msra.mxu0 0.0
  %241 = vmatprep.subr.mxu0 0.0
  %242 = vmatpush1.msra.mxu0 0.0
  %243 = vmatprep.subr.mxu0 0.0
  %244 = vmatpush1.msra.mxu0 0.0
  %245 = vmatprep.subr.mxu0 0.0
  %246 = vmatpush1.msra.mxu0 0.0
  %247 = vmatprep.subr.mxu0 0.0
  %248 = vmatpush1.msra.mxu0 0.0
  %249 = vmatprep.subr.mxu0 0.0
  %250 = vmatpush1.msra.mxu0 0.0
  %251 = vmatprep.subr.mxu0 0.0
  %252 = vmatpush1.msra.mxu0 0.0
  %253 = vmatprep.subr.mxu0 0.0
  %254 = vmatpush1.msra.mxu0 0.0
  %255 = vmatprep.subr.mxu0 0.0
  %256 = vmatpush1.msra.mxu0 0.0
  %257 = vmatprep.subr.mxu0 0.0
  %258 = vmatpush1.msra.mxu0 0.0
  %259 = vmatprep.subr.mxu0 0.0
  %260 = vmatpush1.msra.mxu0 0.0
  %261 = vmatprep.subr.mxu0 0.0
  %262 = vmatpush1.msra.mxu0 0.0
  %263 = vmatprep.subr.mxu0 0.0
  %264 = vmatpush1.msra.mxu0 0.0
  %265 = vmatprep.subr.mxu0 0.0
  %266 = vmatpush1.msra.mxu0 0.0
  %267 = vmatprep.subr.mxu0 0.0
  %268 = vmatpush1.msra.mxu0 0.0
  %269 = vmatprep.subr.mxu0 0.0
  %270 = vmatpush1.msra.mxu0 0.0
  %271 = vmatprep.subr.mxu0 0.0
  %272 = vmatpush1.msra.mxu0 0.0
  %273 = vmatprep.subr.mxu0 0.0
  %274 = vmatpush1.msra.mxu0 0.0
  %275 = vmatprep.subr.mxu0 0.0
  %276 = vmatpush1.msra.mxu0 0.0
  %277 = vmatprep.subr.mxu0 0.0
  %278 = vmatpush1.msra.mxu0 0.0
  %279 = vmatprep.subr.mxu0 0.0
  %280 = vmatpush1.msra.mxu0 0.0
  %281 = vmatprep.subr.mxu0 0.0
  %282 = vmatpush1.msra.mxu0 0.0
  %283 = vmatprep.subr.mxu0 0.0
  %284 = vmatpush1.msra.mxu0 0.0
  %285 = vmatprep.subr.mxu0 0.0
  %286 = vmatpush1.msra.mxu0 0.0
  %287 = vmatprep.subr.mxu0 0.0
  %288 = vmatpush1.msra.mxu0 0.0
  %289 = vmatprep.subr.mxu0 0.0
  %290 = vmatpush1.msra.mxu0 0.0
  %291 = vmatprep.mubr.f32.mxu0 0.0
  %292 = vmatmul.mubr.f32.gmra.mrb[0].mxu0 %v225
  %v293 = vpop.f32.mrb[0].mxu0
  %v294 = vadd.f32 0.0, %v293
  %v295 = vpop.f32.mrb[0].mxu0
  %v296 = vadd.f32 0.0, %v295
  %297 = vdwg.mxu0
  %v298 = vld [vmem:[%s10] sm:$0x1]
  %v300 = vlaneseq
  %v301 = vshrl.u32 %v300, 7
  %v302 = vsub.s32 0, %v301
  %v303 = vrot.slane %v298, %v302
  %v305 = vadd.f32 %v296, %v303
  %v306 = vmax.f32 %v305, 0.0
  %v307 = vld [vmem:[%s4] sm:$0xff]
  %v308 = vld [vmem:[%s4 + $0x8] sm:$0xff]
  %v309 = vld [vmem:[%s4 + $0x10] sm:$0xff]
  %v310 = vld [vmem:[%s4 + $0x18] sm:$0xff]
  %v311 = vld [vmem:[%s11] sm:$0x1]
  %v313 = vlaneseq
  %v314 = vshrl.u32 %v313, 7
  %v315 = vsub.s32 0, %v314
  %v316 = vrot.slane %v311, %v315
  %v319 = vsel %vm50, %v306, 0
  %321 = vmatprep.subr.mxu0 0.0
  %322 = vmatpush1.msra.mxu0 %v307
  %323 = vmatprep.subr.mxu0 0.0
  %324 = vmatpush1.msra.mxu0 %v308
  %325 = vmatprep.subr.mxu0 0.0
  %326 = vmatpush1.msra.mxu0 %v309
  %327 = vmatprep.subr.mxu0 0.0
  %328 = vmatpush1.msra.mxu0 %v310
  %329 = vmatprep.subr.mxu0 0.0
  %330 = vmatpush1.msra.mxu0 0.0
  %331 = vmatprep.subr.mxu0 0.0
  %332 = vmatpush1.msra.mxu0 0.0
  %333 = vmatprep.subr.mxu0 0.0
  %334 = vmatpush1.msra.mxu0 0.0
  %335 = vmatprep.subr.mxu0 0.0
  %336 = vmatpush1.msra.mxu0 0.0
  %337 = vmatprep.subr.mxu0 0.0
  %338 = vmatpush1.msra.mxu0 0.0
  %339 = vmatprep.subr.mxu0 0.0
  %340 = vmatpush1.msra.mxu0 0.0
  %341 = vmatprep.subr.mxu0 0.0
  %342 = vmatpush1.msra.mxu0 0.0
  %343 = vmatprep.subr.mxu0 0.0
  %344 = vmatpush1.msra.mxu0 0.0
  %345 = vmatprep.subr.mxu0 0.0
  %346 = vmatpush1.msra.mxu0 0.0
  %347 = vmatprep.subr.mxu0 0.0
  %348 = vmatpush1.msra.mxu0 0.0
  %349 = vmatprep.subr.mxu0 0.0
  %350 = vmatpush1.msra.mxu0 0.0
  %351 = vmatprep.subr.mxu0 0.0
  %352 = vmatpush1.msra.mxu0 0.0
  %353 = vmatprep.subr.mxu0 0.0
  %354 = vmatpush1.msra.mxu0 0.0
  %355 = vmatprep.subr.mxu0 0.0
  %356 = vmatpush1.msra.mxu0 0.0
  %357 = vmatprep.subr.mxu0 0.0
  %358 = vmatpush1.msra.mxu0 0.0
  %359 = vmatprep.subr.mxu0 0.0
  %360 = vmatpush1.msra.mxu0 0.0
  %361 = vmatprep.subr.mxu0 0.0
  %362 = vmatpush1.msra.mxu0 0.0
  %363 = vmatprep.subr.mxu0 0.0
  %364 = vmatpush1.msra.mxu0 0.0
  %365 = vmatprep.subr.mxu0 0.0
  %366 = vmatpush1.msra.mxu0 0.0
  %367 = vmatprep.subr.mxu0 0.0
  %368 = vmatpush1.msra.mxu0 0.0
  %369 = vmatprep.subr.mxu0 0.0
  %370 = vmatpush1.msra.mxu0 0.0
  %371 = vmatprep.subr.mxu0 0.0
  %372 = vmatpush1.msra.mxu0 0.0
  %373 = vmatprep.subr.mxu0 0.0
  %374 = vmatpush1.msra.mxu0 0.0
  %375 = vmatprep.subr.mxu0 0.0
  %376 = vmatpush1.msra.mxu0 0.0
  %377 = vmatprep.subr.mxu0 0.0
  %378 = vmatpush1.msra.mxu0 0.0
  %379 = vmatprep.subr.mxu0 0.0
  %380 = vmatpush1.msra.mxu0 0.0
  %381 = vmatprep.subr.mxu0 0.0
  %382 = vmatpush1.msra.mxu0 0.0
  %383 = vmatprep.subr.mxu0 0.0
  %384 = vmatpush1.msra.mxu0 0.0
  %385 = vmatprep.mubr.f32.mxu0 0.0
  %386 = vmatmul.mubr.f32.gmra.mrb[0].mxu0 %v319
  %v387 = vpop.f32.mrb[0].mxu0
  %v388 = vadd.f32 %v316, %v387
  %v389 = vpop.f32.mrb[0].mxu0
  %390 = vdwg.mxu0
  %v391 = vsub.f32 0.0, %v388
  %v392 = vmul.f32 %v391, 1.442695
  %v393 = vpow.pop %v392
  %v394 = vadd.f32 %v393, 1.0
  %v395 = vrcp.pop %v394
  %v396 = vadd.f32 %v121, %v294
  %v397 = vld [vmem:[%s6] sm:$0x1]
  %v399 = vlaneseq
  %v400 = vshrl.u32 %v399, 7
  %v401 = vsub.s32 0, %v400
  %v402 = vrot.slane %v397, %v401
  %v404 = vadd.f32 %v396, %v402
  %v405 = vmax.f32 %v404, 0.0
  %v406 = vld [vmem:[%s5] sm:$0xff]
  %v407 = vld [vmem:[%s5 + $0x8] sm:$0xff]
  %v408 = vld [vmem:[%s5 + $0x10] sm:$0xff]
  %v409 = vld [vmem:[%s5 + $0x18] sm:$0xff]
  %v410 = vld [vmem:[%s5 + $0x20] sm:$0xff]
  %v411 = vld [vmem:[%s5 + $0x28] sm:$0xff]
  %v412 = vld [vmem:[%s5 + $0x30] sm:$0xff]
  %v413 = vld [vmem:[%s5 + $0x38] sm:$0xff]
  %v414 = vld [vmem:[%s5 + $0x40] sm:$0xff]
  %v415 = vld [vmem:[%s5 + $0x48] sm:$0xff]
  %v416 = vld [vmem:[%s5 + $0x50] sm:$0xff]
  %v417 = vld [vmem:[%s5 + $0x58] sm:$0xff]
  %v418 = vld [vmem:[%s5 + $0x60] sm:$0xff]
  %v419 = vld [vmem:[%s5 + $0x68] sm:$0xff]
  %v420 = vld [vmem:[%s5 + $0x70] sm:$0xff]
  %v421 = vld [vmem:[%s5 + $0x78] sm:$0xff]
  %v422 = vld [vmem:[%s7] sm:$0x1]
  %v424 = vlaneseq
  %v425 = vshrl.u32 %v424, 7
  %v426 = vsub.s32 0, %v425
  %v427 = vrot.slane %v422, %v426
  %429 = vmatprep.subr.mxu0 0.0
  %430 = vmatpush1.msra.mxu0 %v406
  %431 = vmatprep.subr.mxu0 0.0
  %432 = vmatpush1.msra.mxu0 %v407
  %433 = vmatprep.subr.mxu0 0.0
  %434 = vmatpush1.msra.mxu0 %v408
  %435 = vmatprep.subr.mxu0 0.0
  %436 = vmatpush1.msra.mxu0 %v409
  %437 = vmatprep.subr.mxu0 0.0
  %438 = vmatpush1.msra.mxu0 %v410
  %439 = vmatprep.subr.mxu0 0.0
  %440 = vmatpush1.msra.mxu0 %v411
  %441 = vmatprep.subr.mxu0 0.0
  %442 = vmatpush1.msra.mxu0 %v412
  %443 = vmatprep.subr.mxu0 0.0
  %444 = vmatpush1.msra.mxu0 %v413
  %445 = vmatprep.subr.mxu0 0.0
  %446 = vmatpush1.msra.mxu0 %v414
  %447 = vmatprep.subr.mxu0 0.0
  %448 = vmatpush1.msra.mxu0 %v415
  %449 = vmatprep.subr.mxu0 0.0
  %450 = vmatpush1.msra.mxu0 %v416
  %451 = vmatprep.subr.mxu0 0.0
  %452 = vmatpush1.msra.mxu0 %v417
  %453 = vmatprep.subr.mxu0 0.0
  %454 = vmatpush1.msra.mxu0 %v418
  %455 = vmatprep.subr.mxu0 0.0
  %456 = vmatpush1.msra.mxu0 %v419
  %457 = vmatprep.subr.mxu0 0.0
  %458 = vmatpush1.msra.mxu0 %v420
  %459 = vmatprep.subr.mxu0 0.0
  %460 = vmatpush1.msra.mxu0 %v421
  %461 = vmatprep.subr.mxu0 0.0
  %462 = vmatpush1.msra.mxu0 0.0
  %463 = vmatprep.subr.mxu0 0.0
  %464 = vmatpush1.msra.mxu0 0.0
  %465 = vmatprep.subr.mxu0 0.0
  %466 = vmatpush1.msra.mxu0 0.0
  %467 = vmatprep.subr.mxu0 0.0
  %468 = vmatpush1.msra.mxu0 0.0
  %469 = vmatprep.subr.mxu0 0.0
  %470 = vmatpush1.msra.mxu0 0.0
  %471 = vmatprep.subr.mxu0 0.0
  %472 = vmatpush1.msra.mxu0 0.0
  %473 = vmatprep.subr.mxu0 0.0
  %474 = vmatpush1.msra.mxu0 0.0
  %475 = vmatprep.subr.mxu0 0.0
  %476 = vmatpush1.msra.mxu0 0.0
  %477 = vmatprep.subr.mxu0 0.0
  %478 = vmatpush1.msra.mxu0 0.0
  %479 = vmatprep.subr.mxu0 0.0
  %480 = vmatpush1.msra.mxu0 0.0
  %481 = vmatprep.subr.mxu0 0.0
  %482 = vmatpush1.msra.mxu0 0.0
  %483 = vmatprep.subr.mxu0 0.0
  %484 = vmatpush1.msra.mxu0 0.0
  %485 = vmatprep.subr.mxu0 0.0
  %486 = vmatpush1.msra.mxu0 0.0
  %487 = vmatprep.subr.mxu0 0.0
  %488 = vmatpush1.msra.mxu0 0.0
  %489 = vmatprep.subr.mxu0 0.0
  %490 = vmatpush1.msra.mxu0 0.0
  %491 = vmatprep.subr.mxu0 0.0
  %492 = vmatpush1.msra.mxu0 0.0
  %493 = vmatprep.mubr.f32.mxu0 0.0
  %494 = vmatmul.mubr.f32.gmra.mrb[0].mxu0 %v405
  %v495 = vpop.f32.mrb[0].mxu0
  %v496 = vadd.f32 %v427, %v495
  %v497 = vpop.f32.mrb[0].mxu0
  %498 = vdwg.mxu0
  %499 = vst.msk [vmem:[%s12] sm:$0xff] %vm223, %v218
  %500 = vst.msk [vmem:[%s12 + $0x8] sm:$0xff] %vm50, %v395
  %vm501 = vcmask 211968
  %502 = vst.msk [vmem:[%s12 + $0x10] sm:$0xff] %vm501, %v496
  // Predicated region
  $region50: #{varmdc_forward.1} parent=0 // pred_check
    _
  $region51: #{varmdc_forward.1} parent=0 // pred_check_branch
    %504 = sbr.rel (0) target = $region53
  $region52: #{varmdc_forward.1} parent=0 // pred_region
    _
  $region53: #{varmdc_forward.1} parent=0 // pred_fallthru
    _
  // Predicated region
  $region54: #{varmdc_forward.1} parent=0 // pred_check
    _
  $region55: #{varmdc_forward.1} parent=0 // pred_check_branch
    %506 = sbr.rel (0) target = $region57
  $region56: #{varmdc_forward.1} parent=0 // pred_region
    _
  $region57: #{varmdc_forward.1} parent=0 // pred_fallthru
    _

</llo_original>
